<compile_context>
chip_gen: v7x
topology: tpu7x:2x2x1
jax: 0.10.0
libtpu: 0.0.40
codegen_flags: <defaults>
</compile_context>

<pallas_src>
import jax
import jax.numpy as jnp
from jax.experimental import pallas as pl
from jax.experimental.pallas import tpu as pltpu

D_IN = 28 * 28      # 784
D_LAT = 30          # PyTorch latent size
D_LAT_PAD = 128     # padded to one full vreg lane width


def _round_up(x, m):
    return ((x + m - 1) // m) * m


def _autoencoder_kernel(x_ref, w1_ref, b1_ref, w2_ref, b2_ref, o_ref):
    # Encoder: tanh(x @ W1 + b1)   -> (TILE_B, 128)  (lanes 30..127 are exactly 0 pre-tanh)
    h = jnp.tanh(
        jnp.dot(x_ref[...], w1_ref[...], preferred_element_type=jnp.float32)
        + b1_ref[...]
    )
    # Decoder: tanh(h @ W2 + b2)   -> (TILE_B, 784)  (padded rows of W2 are 0, contribute nothing)
    y = jnp.tanh(
        jnp.dot(h, w2_ref[...], preferred_element_type=jnp.float32)
        + b2_ref[...]
    )
    o_ref[...] = y.astype(o_ref.dtype)


def autoencoder_forward(x, w1, b1, w2, b2, *, tile_b=512):
    """x: (B, 784) f32; w1: (784, 30); b1: (1, 30); w2: (30, 784); b2: (1, 784).

    Returns (B, 784) f32, identical to tanh(tanh(x @ w1 + b1) @ w2 + b2).
    """
    B = x.shape[0]

    # --- pad latent dim 30 -> 128 once, outside the kernel (zero padding is exact) ---
    w1p = jnp.zeros((D_IN, D_LAT_PAD), jnp.float32).at[:, :D_LAT].set(w1)
    b1p = jnp.zeros((1, D_LAT_PAD), jnp.float32).at[:, :D_LAT].set(b1)
    w2p = jnp.zeros((D_LAT_PAD, D_IN), jnp.float32).at[:D_LAT, :].set(w2)
    b2p = b2.reshape(1, D_IN).astype(jnp.float32)

    # --- pick batch tile and pad batch so every grid step is a full block ---
    tile_b = min(tile_b, _round_up(B, 8))          # never larger than (padded) batch
    b_pad = _round_up(B, tile_b)
    if b_pad != B:
        x = jnp.pad(x, ((0, b_pad - B), (0, 0)))
    n_tiles = b_pad // tile_b

    out = pl.pallas_call(
        _autoencoder_kernel,
        out_shape=jax.ShapeDtypeStruct((b_pad, D_IN), jnp.float32),
        grid_spec=pltpu.PrefetchScalarGridSpec(
            num_scalar_prefetch=0,
            grid=(n_tiles,),
            in_specs=[
                # x: tiled along batch, full 784 feature extent (lane-dense)
                pl.BlockSpec((tile_b, D_IN), lambda i: (i, 0)),
                # weights/biases: full-extent blocks, constant index_map -> VMEM-resident
                pl.BlockSpec((D_IN, D_LAT_PAD), lambda i: (0, 0)),
                pl.BlockSpec((1, D_LAT_PAD), lambda i: (0, 0)),
                pl.BlockSpec((D_LAT_PAD, D_IN), lambda i: (0, 0)),
                pl.BlockSpec((1, D_IN), lambda i: (0, 0)),
            ],
            out_specs=pl.BlockSpec((tile_b, D_IN), lambda i: (i, 0)),
        ),
        compiler_params=pltpu.CompilerParams(
            dimension_semantics=("parallel",),   # lets v7x shard batch tiles across its 2 TCs
        ),
    )(x, w1p, b1p, w2p, b2p)

    return out[:B]


def init_params(key):
    """Deterministic init mimicking nn.Linear default (uniform +-1/sqrt(fan_in))."""
    k1, k2, k3, k4 = jax.random.split(key, 4)
    bound1 = 1.0 / jnp.sqrt(jnp.float32(D_IN))
    bound2 = 1.0 / jnp.sqrt(jnp.float32(D_LAT))
    w1 = jax.random.uniform(k1, (D_IN, D_LAT), jnp.float32, -bound1, bound1)
    b1 = jax.random.uniform(k2, (1, D_LAT), jnp.float32, -bound1, bound1)
    w2 = jax.random.uniform(k3, (D_LAT, D_IN), jnp.float32, -bound2, bound2)
    b2 = jax.random.uniform(k4, (1, D_IN), jnp.float32, -bound2, bound2)
    return w1, b1, w2, b2


def reference_forward(x, w1, b1, w2, b2):
    h = jnp.tanh(x @ w1 + b1)
    return jnp.tanh(h @ w2 + b2)


if __name__ == "__main__":
    key = jax.random.PRNGKey(0)
    kx, kp, kx2 = jax.random.split(key, 3)

    w1, b1, w2, b2 = init_params(kp)

    # Small batch: single grid step.
    B = 8
    x = jax.random.normal(kx, (B, D_IN), jnp.float32)
    out = jax.block_until_ready(autoencoder_forward(x, w1, b1, w2, b2))
    ref = reference_forward(x, w1, b1, w2, b2)
    assert out.shape == (B, D_IN)
    assert jnp.allclose(out, ref, atol=1e-5, rtol=1e-5), "mismatch vs reference (B=8)"

    # Multi-tile batch with padding: exercises the batch grid / tile path.
    B2 = 300
    x2 = jax.random.normal(kx2, (B2, D_IN), jnp.float32)
    out2 = jax.block_until_ready(autoencoder_forward(x2, w1, b1, w2, b2, tile_b=128))
    ref2 = reference_forward(x2, w1, b1, w2, b2)
    assert out2.shape == (B2, D_IN)
    assert jnp.allclose(out2, ref2, atol=1e-5, rtol=1e-5), "mismatch vs reference (B=300)"

    print("KERNEL_OK")
</pallas_src>

<mosaic_0001>
module attributes {stable_mosaic.version = 11 : i64} {
  func.func @_autoencoder_kernel(%arg0: i32, %arg1: memref<8x784xf32, #tpu.memory_space<vmem>>, %arg2: memref<784x128xf32, #tpu.memory_space<vmem>>, %arg3: memref<1x128xf32, #tpu.memory_space<vmem>>, %arg4: memref<128x784xf32, #tpu.memory_space<vmem>>, %arg5: memref<1x784xf32, #tpu.memory_space<vmem>>, %arg6: memref<8x784xf32, #tpu.memory_space<vmem>>) attributes {dimension_semantics = [#tpu.dimension_semantics<parallel>], iteration_bounds = array<i64: 1>, scalar_prefetch = 0 : i64, scratch_operands = 0 : i64, tpu.core_type = #tpu.core_type<tc>, window_params = [{transform_indices = @transform_0, window_bounds = array<i64: 8, 784>}, {pipeline_mode = #tpu.pipeline_mode<synchronous>, transform_indices = @transform_1, window_bounds = array<i64: 784, 128>}, {pipeline_mode = #tpu.pipeline_mode<synchronous>, transform_indices = @transform_2, window_bounds = array<i64: 1, 128>}, {pipeline_mode = #tpu.pipeline_mode<synchronous>, transform_indices = @transform_3, window_bounds = array<i64: 128, 784>}, {pipeline_mode = #tpu.pipeline_mode<synchronous>, transform_indices = @transform_4, window_bounds = array<i64: 1, 784>}, {transform_indices = @transform_5, window_bounds = array<i64: 8, 784>}]} {
    %c0 = arith.constant 0 : index
    %c0_0 = arith.constant 0 : index
    %0 = vector.load %arg1[%c0, %c0_0] : memref<8x784xf32, #tpu.memory_space<vmem>>, vector<8x784xf32>
    %c0_1 = arith.constant 0 : index
    %c0_2 = arith.constant 0 : index
    %1 = vector.load %arg2[%c0_1, %c0_2] : memref<784x128xf32, #tpu.memory_space<vmem>>, vector<784x128xf32>
    %cst = arith.constant dense<0.000000e+00> : vector<8x128xf32>
    %2 = tpu.matmul %0, %1, %cst {dimension_numbers = #tpu.dot_dimension_numbers<[1], [0], [0], [1], [0, 0, 1, 1], [], []>} : vector<8x784xf32>, vector<784x128xf32>, vector<8x128xf32> -> vector<8x128xf32>
    %c0_3 = arith.constant 0 : index
    %c0_4 = arith.constant 0 : index
    %3 = vector.load %arg3[%c0_3, %c0_4] : memref<1x128xf32, #tpu.memory_space<vmem>>, vector<1x128xf32>
    %4 = vector.broadcast %3 : vector<1x128xf32> to vector<8x128xf32>
    %5 = arith.addf %2, %4 : vector<8x128xf32>
    %6 = math.tanh %5 : vector<8x128xf32>
    %c0_5 = arith.constant 0 : index
    %c0_6 = arith.constant 0 : index
    %7 = vector.load %arg4[%c0_5, %c0_6] : memref<128x784xf32, #tpu.memory_space<vmem>>, vector<128x784xf32>
    %cst_7 = arith.constant dense<0.000000e+00> : vector<8x784xf32>
    %8 = tpu.matmul %6, %7, %cst_7 {dimension_numbers = #tpu.dot_dimension_numbers<[1], [0], [0], [1], [0, 0, 1, 1], [], []>} : vector<8x128xf32>, vector<128x784xf32>, vector<8x784xf32> -> vector<8x784xf32>
    %c0_8 = arith.constant 0 : index
    %c0_9 = arith.constant 0 : index
    %9 = vector.load %arg5[%c0_8, %c0_9] : memref<1x784xf32, #tpu.memory_space<vmem>>, vector<1x784xf32>
    %10 = vector.broadcast %9 : vector<1x784xf32> to vector<8x784xf32>
    %11 = arith.addf %8, %10 : vector<8x784xf32>
    %12 = math.tanh %11 : vector<8x784xf32>
    %c0_10 = arith.constant 0 : index
    %c0_11 = arith.constant 0 : index
    %13 = vector.load %arg6[%c0_10, %c0_11] : memref<8x784xf32, #tpu.memory_space<vmem>>, vector<8x784xf32>
    tpu.vector_store %arg6[%c0_10, %c0_11], %12 {strides = array<i32>} : memref<8x784xf32, #tpu.memory_space<vmem>>, vector<8x784xf32>,
    return
  }
  func.func @transform_0(%arg0: i32) -> (i32, i32) {
    %c0_i32 = arith.constant 0 : i32
    %c0_i32_0 = arith.constant 0 : i32
    return %arg0, %c0_i32 : i32, i32
  }
  func.func @transform_1(%arg0: i32) -> (i32, i32) {
    %c0_i32 = arith.constant 0 : i32
    %c0_i32_0 = arith.constant 0 : i32
    %c0_i32_1 = arith.constant 0 : i32
    return %c0_i32, %c0_i32_0 : i32, i32
  }
  func.func @transform_2(%arg0: i32) -> (i32, i32) {
    %c0_i32 = arith.constant 0 : i32
    %c0_i32_0 = arith.constant 0 : i32
    %c0_i32_1 = arith.constant 0 : i32
    return %c0_i32, %c0_i32_0 : i32, i32
  }
  func.func @transform_3(%arg0: i32) -> (i32, i32) {
    %c0_i32 = arith.constant 0 : i32
    %c0_i32_0 = arith.constant 0 : i32
    %c0_i32_1 = arith.constant 0 : i32
    return %c0_i32, %c0_i32_0 : i32, i32
  }
  func.func @transform_4(%arg0: i32) -> (i32, i32) {
    %c0_i32 = arith.constant 0 : i32
    %c0_i32_0 = arith.constant 0 : i32
    %c0_i32_1 = arith.constant 0 : i32
    return %c0_i32, %c0_i32_0 : i32, i32
  }
  func.func @transform_5(%arg0: i32) -> (i32, i32) {
    %c0_i32 = arith.constant 0 : i32
    %c0_i32_0 = arith.constant 0 : i32
    return %arg0, %c0_i32 : i32, i32
  }
}

</mosaic_0001>

<llo_original>
// kernel: tpu_custom_call.1
$region0: #{tpu_custom_call.1}
  #allocation0 [shape = 'u32[]', space=smem, size = 0x4, offset = 0x4, fixed_abs, tag = 'smem constant byte address 0x4 - core index']
  #allocation1 [shape = 'u32[144,128]{1,0:T(1,128)}', space=vmem, size = 0x12000, scoped, tag = 'internal scratch']
  %s0 = inlined_call_operand.vmem [shape: f32[8,784], index: 0, kind: input, shape index: {}]
  %s1 = inlined_call_operand.vmem [shape: f32[784,128], index: 1, kind: input, shape index: {}]
  %s2 = inlined_call_operand.vmem [shape: f32[1,128], index: 2, kind: input, shape index: {}]
  %s3 = inlined_call_operand.vmem [shape: f32[128,784], index: 3, kind: input, shape index: {}]
  %s4 = inlined_call_operand.vmem [shape: f32[1,784], index: 4, kind: input, shape index: {}]
  %s5 = inlined_call_operand.hbm [shape: f32[8,784], index: 5, kind: output, shape index: {}]
  %s6 = sld [smem:[#allocation0]]
  $region30: #{tpu_custom_call.1} parent=0
    _
  %s8 = ssub.s32 1, %s6
  %s9 = scalar_select 0, %s8, %s6
  $region1: #{tpu_custom_call.1} parent=0
    #allocation2 [shape = 'u8[28672]{0}', space=vmem, size = 0x7000, scoped, tag = 'output window, operand 0, single buffered']
    #allocation3 [shape = 's32[1]{0}', space=sflag, size = 0x4, scoped, tag = 'scoped memory for tpu_custom_call.1']
    %10 = vsyncpa [#allocation3], 0
    // Predicated region
    $region2: #{tpu_custom_call.1} parent=1 // pred_check
      _
    $region3: #{tpu_custom_call.1} parent=1 // pred_check_branch
      %12 = sbr.rel (0) target = $region5
    $region4: #{tpu_custom_call.1} parent=1 // pred_region
      _
    $region5: #{tpu_custom_call.1} parent=1 // pred_fallthru
      _
    // Predicated region
    $region6: #{tpu_custom_call.1} parent=1 // pred_check
      _
    $region7: #{tpu_custom_call.1} parent=1 // pred_check_branch
      %14 = sbr.rel (0) target = $region9
    $region8: #{tpu_custom_call.1} parent=1 // pred_region
      _
    $region9: #{tpu_custom_call.1} parent=1 // pred_fallthru
      _
    // Predicated region
    $region10: #{tpu_custom_call.1} parent=1 // pred_check
      _
    $region11: #{tpu_custom_call.1} parent=1 // pred_check_branch
      %16 = sbr.rel (0) target = $region13
    $region12: #{tpu_custom_call.1} parent=1 // pred_region
      _
    $region13: #{tpu_custom_call.1} parent=1 // pred_fallthru
      _
    // Predicated region
    $region14: #{tpu_custom_call.1} parent=1 // pred_check
      _
    $region15: #{tpu_custom_call.1} parent=1 // pred_check_branch
      %18 = sbr.rel (0) target = $region17
    $region16: #{tpu_custom_call.1} parent=1 // pred_region
      _
    $region17: #{tpu_custom_call.1} parent=1 // pred_fallthru
      _
    // Predicated region
    $region18: #{tpu_custom_call.1} parent=1 // pred_check
      _
    $region19: #{tpu_custom_call.1} parent=1 // pred_check_branch
      %20 = sbr.rel (0) target = $region21
    $region20: #{tpu_custom_call.1} parent=1 // pred_region
      _
    $region21: #{tpu_custom_call.1} parent=1 // pred_fallthru
      _
    %v21 = vld [vmem:[%s0] sm:$0xff]
    %v22 = vld [vmem:[%s0 + $0x8] sm:$0xff]
    %v23 = vld [vmem:[%s0 + $0x10] sm:$0xff]
    %v24 = vld [vmem:[%s0 + $0x18] sm:$0xff]
    %v25 = vld [vmem:[%s0 + $0x20] sm:$0xff]
    %v26 = vld [vmem:[%s0 + $0x28] sm:$0xff]
    %v27 = vld [vmem:[%s0 + $0x30] sm:$0xff]
    %v28 = vld [vmem:[%s1] sm:$0xff]
    %v29 = vld [vmem:[%s1 + $0x8] sm:$0xff]
    %v30 = vld [vmem:[%s1 + $0x10] sm:$0xff]
    %v31 = vld [vmem:[%s1 + $0x18] sm:$0xff]
    %v32 = vld [vmem:[%s1 + $0x20] sm:$0xff]
    %v33 = vld [vmem:[%s1 + $0x28] sm:$0xff]
    %v34 = vld [vmem:[%s1 + $0x30] sm:$0xff]
    %v35 = vld [vmem:[%s1 + $0x38] sm:$0xff]
    %v36 = vld [vmem:[%s1 + $0x40] sm:$0xff]
    %v37 = vld [vmem:[%s1 + $0x48] sm:$0xff]
    %v38 = vld [vmem:[%s1 + $0x50] sm:$0xff]
    %v39 = vld [vmem:[%s1 + $0x58] sm:$0xff]
    %v40 = vld [vmem:[%s1 + $0x60] sm:$0xff]
    %v41 = vld [vmem:[%s1 + $0x68] sm:$0xff]
    %v42 = vld [vmem:[%s1 + $0x70] sm:$0xff]
    %v43 = vld [vmem:[%s1 + $0x78] sm:$0xff]
    %v44 = vld [vmem:[%s1 + $0x80] sm:$0xff]
    %v45 = vld [vmem:[%s1 + $0x88] sm:$0xff]
    %v46 = vld [vmem:[%s1 + $0x90] sm:$0xff]
    %v47 = vld [vmem:[%s1 + $0x98] sm:$0xff]
    %v48 = vld [vmem:[%s1 + $0xa0] sm:$0xff]
    %v49 = vld [vmem:[%s1 + $0xa8] sm:$0xff]
    %v50 = vld [vmem:[%s1 + $0xb0] sm:$0xff]
    %v51 = vld [vmem:[%s1 + $0xb8] sm:$0xff]
    %v52 = vld [vmem:[%s1 + $0xc0] sm:$0xff]
    %v53 = vld [vmem:[%s1 + $0xc8] sm:$0xff]
    %v54 = vld [vmem:[%s1 + $0xd0] sm:$0xff]
    %v55 = vld [vmem:[%s1 + $0xd8] sm:$0xff]
    %v56 = vld [vmem:[%s1 + $0xe0] sm:$0xff]
    %v57 = vld [vmem:[%s1 + $0xe8] sm:$0xff]
    %v58 = vld [vmem:[%s1 + $0xf0] sm:$0xff]
    %v59 = vld [vmem:[%s1 + $0xf8] sm:$0xff]
    %v60 = vld [vmem:[%s1 + $0x100] sm:$0xff]
    %v61 = vld [vmem:[%s1 + $0x108] sm:$0xff]
    %v62 = vld [vmem:[%s1 + $0x110] sm:$0xff]
    %v63 = vld [vmem:[%s1 + $0x118] sm:$0xff]
    %v64 = vld [vmem:[%s1 + $0x120] sm:$0xff]
    %v65 = vld [vmem:[%s1 + $0x128] sm:$0xff]
    %v66 = vld [vmem:[%s1 + $0x130] sm:$0xff]
    %v67 = vld [vmem:[%s1 + $0x138] sm:$0xff]
    %v68 = vld [vmem:[%s1 + $0x140] sm:$0xff]
    %v69 = vld [vmem:[%s1 + $0x148] sm:$0xff]
    %v70 = vld [vmem:[%s1 + $0x150] sm:$0xff]
    %v71 = vld [vmem:[%s1 + $0x158] sm:$0xff]
    %v72 = vld [vmem:[%s1 + $0x160] sm:$0xff]
    %v73 = vld [vmem:[%s1 + $0x168] sm:$0xff]
    %v74 = vld [vmem:[%s1 + $0x170] sm:$0xff]
    %v75 = vld [vmem:[%s1 + $0x178] sm:$0xff]
    %v76 = vld [vmem:[%s1 + $0x180] sm:$0xff]
    %v77 = vld [vmem:[%s1 + $0x188] sm:$0xff]
    %v78 = vld [vmem:[%s1 + $0x190] sm:$0xff]
    %v79 = vld [vmem:[%s1 + $0x198] sm:$0xff]
    %v80 = vld [vmem:[%s1 + $0x1a0] sm:$0xff]
    %v81 = vld [vmem:[%s1 + $0x1a8] sm:$0xff]
    %v82 = vld [vmem:[%s1 + $0x1b0] sm:$0xff]
    %v83 = vld [vmem:[%s1 + $0x1b8] sm:$0xff]
    %v84 = vld [vmem:[%s1 + $0x1c0] sm:$0xff]
    %v85 = vld [vmem:[%s1 + $0x1c8] sm:$0xff]
    %v86 = vld [vmem:[%s1 + $0x1d0] sm:$0xff]
    %v87 = vld [vmem:[%s1 + $0x1d8] sm:$0xff]
    %v88 = vld [vmem:[%s1 + $0x1e0] sm:$0xff]
    %v89 = vld [vmem:[%s1 + $0x1e8] sm:$0xff]
    %v90 = vld [vmem:[%s1 + $0x1f0] sm:$0xff]
    %v91 = vld [vmem:[%s1 + $0x1f8] sm:$0xff]
    %v92 = vld [vmem:[%s1 + $0x200] sm:$0xff]
    %v93 = vld [vmem:[%s1 + $0x208] sm:$0xff]
    %v94 = vld [vmem:[%s1 + $0x210] sm:$0xff]
    %v95 = vld [vmem:[%s1 + $0x218] sm:$0xff]
    %v96 = vld [vmem:[%s1 + $0x220] sm:$0xff]
    %v97 = vld [vmem:[%s1 + $0x228] sm:$0xff]
    %v98 = vld [vmem:[%s1 + $0x230] sm:$0xff]
    %v99 = vld [vmem:[%s1 + $0x238] sm:$0xff]
    %v100 = vld [vmem:[%s1 + $0x240] sm:$0xff]
    %v101 = vld [vmem:[%s1 + $0x248] sm:$0xff]
    %v102 = vld [vmem:[%s1 + $0x250] sm:$0xff]
    %v103 = vld [vmem:[%s1 + $0x258] sm:$0xff]
    %v104 = vld [vmem:[%s1 + $0x260] sm:$0xff]
    %v105 = vld [vmem:[%s1 + $0x268] sm:$0xff]
    %v106 = vld [vmem:[%s1 + $0x270] sm:$0xff]
    %v107 = vld [vmem:[%s1 + $0x278] sm:$0xff]
    %v108 = vld [vmem:[%s1 + $0x280] sm:$0xff]
    %v109 = vld [vmem:[%s1 + $0x288] sm:$0xff]
    %v110 = vld [vmem:[%s1 + $0x290] sm:$0xff]
    %v111 = vld [vmem:[%s1 + $0x298] sm:$0xff]
    %v112 = vld [vmem:[%s1 + $0x2a0] sm:$0xff]
    %v113 = vld [vmem:[%s1 + $0x2a8] sm:$0xff]
    %v114 = vld [vmem:[%s1 + $0x2b0] sm:$0xff]
    %v115 = vld [vmem:[%s1 + $0x2b8] sm:$0xff]
    %v116 = vld [vmem:[%s1 + $0x2c0] sm:$0xff]
    %v117 = vld [vmem:[%s1 + $0x2c8] sm:$0xff]
    %v118 = vld [vmem:[%s1 + $0x2d0] sm:$0xff]
    %v119 = vld [vmem:[%s1 + $0x2d8] sm:$0xff]
    %v120 = vld [vmem:[%s1 + $0x2e0] sm:$0xff]
    %v121 = vld [vmem:[%s1 + $0x2e8] sm:$0xff]
    %v122 = vld [vmem:[%s1 + $0x2f0] sm:$0xff]
    %v123 = vld [vmem:[%s1 + $0x2f8] sm:$0xff]
    %v124 = vld [vmem:[%s1 + $0x300] sm:$0xff]
    %v125 = vld [vmem:[%s1 + $0x308] sm:$0xff]
    %v126 = vld [vmem:[%s2] sm:$0x1]
    %v128 = vlaneseq
    %v129 = vshrl.u32 %v128, 7
    %v130 = vsub.s32 0, %v129
    %v131 = vrot.slane %v126, %v130
    %vm133 = vcmask 130048
    %v135 = vsel %vm133, %v27, 0
    %137 = vmatprep.subr.mxu0 0.0
    %138 = vmatpush1.msra.mxu0 %v28
    %139 = vmatprep.subr.mxu0 0.0
    %140 = vmatpush1.msra.mxu0 %v29
    %141 = vmatprep.subr.mxu0 0.0
    %142 = vmatpush1.msra.mxu0 %v30
    %143 = vmatprep.subr.mxu0 0.0
    %144 = vmatpush1.msra.mxu0 %v31
    %145 = vmatprep.subr.mxu0 0.0
    %146 = vmatpush1.msra.mxu0 %v32
    %147 = vmatprep.subr.mxu0 0.0
    %148 = vmatpush1.msra.mxu0 %v33
    %149 = vmatprep.subr.mxu0 0.0
    %150 = vmatpush1.msra.mxu0 %v34
    %151 = vmatprep.subr.mxu0 0.0
    %152 = vmatpush1.msra.mxu0 %v35
    %153 = vmatprep.subr.mxu0 0.0
    %154 = vmatpush1.msra.mxu0 %v36
    %155 = vmatprep.subr.mxu0 0.0
    %156 = vmatpush1.msra.mxu0 %v37
    %157 = vmatprep.subr.mxu0 0.0
    %158 = vmatpush1.msra.mxu0 %v38
    %159 = vmatprep.subr.mxu0 0.0
    %160 = vmatpush1.msra.mxu0 %v39
    %161 = vmatprep.subr.mxu0 0.0
    %162 = vmatpush1.msra.mxu0 %v40
    %163 = vmatprep.subr.mxu0 0.0
    %164 = vmatpush1.msra.mxu0 %v41
    %165 = vmatprep.subr.mxu0 0.0
    %166 = vmatpush1.msra.mxu0 %v42
    %167 = vmatprep.subr.mxu0 0.0
    %168 = vmatpush1.msra.mxu0 %v43
    %169 = vmatprep.subr.mxu0 0.0
    %170 = vmatpush1.msra.mxu0 %v44
    %171 = vmatprep.subr.mxu0 0.0
    %172 = vmatpush1.msra.mxu0 %v45
    %173 = vmatprep.subr.mxu0 0.0
    %174 = vmatpush1.msra.mxu0 %v46
    %175 = vmatprep.subr.mxu0 0.0
    %176 = vmatpush1.msra.mxu0 %v47
    %177 = vmatprep.subr.mxu0 0.0
    %178 = vmatpush1.msra.mxu0 %v48
    %179 = vmatprep.subr.mxu0 0.0
    %180 = vmatpush1.msra.mxu0 %v49
    %181 = vmatprep.subr.mxu0 0.0
    %182 = vmatpush1.msra.mxu0 %v50
    %183 = vmatprep.subr.mxu0 0.0
    %184 = vmatpush1.msra.mxu0 %v51
    %185 = vmatprep.subr.mxu0 0.0
    %186 = vmatpush1.msra.mxu0 %v52
    %187 = vmatprep.subr.mxu0 0.0
    %188 = vmatpush1.msra.mxu0 %v53
    %189 = vmatprep.subr.mxu0 0.0
    %190 = vmatpush1.msra.mxu0 %v54
    %191 = vmatprep.subr.mxu0 0.0
    %192 = vmatpush1.msra.mxu0 %v55
    %193 = vmatprep.subr.mxu0 0.0
    %194 = vmatpush1.msra.mxu0 %v56
    %195 = vmatprep.subr.mxu0 0.0
    %196 = vmatpush1.msra.mxu0 %v57
    %197 = vmatprep.subr.mxu0 0.0
    %198 = vmatpush1.msra.mxu0 %v58
    %199 = vmatprep.subr.mxu0 0.0
    %200 = vmatpush1.msra.mxu0 %v59
    %201 = vmatprep.mubr.f32.mxu0 %v22
    %202 = vmatmul.mubr.f32.gmra.mrb[0].mxu0 %v21
    %v203 = vpop.f32.mrb[0].mxu0
    %v204 = vadd.f32 %v131, %v203
    %v205 = vpop.f32.mrb[0].mxu0
    %206 = vdwg.mxu0
    %207 = vmatprep.subr.mxu0 0.0
    %208 = vmatpush1.msra.mxu0 %v60
    %209 = vmatprep.subr.mxu0 0.0
    %210 = vmatpush1.msra.mxu0 %v61
    %211 = vmatprep.subr.mxu0 0.0
    %212 = vmatpush1.msra.mxu0 %v62
    %213 = vmatprep.subr.mxu0 0.0
    %214 = vmatpush1.msra.mxu0 %v63
    %215 = vmatprep.subr.mxu0 0.0
    %216 = vmatpush1.msra.mxu0 %v64
    %217 = vmatprep.subr.mxu0 0.0
    %218 = vmatpush1.msra.mxu0 %v65
    %219 = vmatprep.subr.mxu0 0.0
    %220 = vmatpush1.msra.mxu0 %v66
    %221 = vmatprep.subr.mxu0 0.0
    %222 = vmatpush1.msra.mxu0 %v67
    %223 = vmatprep.subr.mxu0 0.0
    %224 = vmatpush1.msra.mxu0 %v68
    %225 = vmatprep.subr.mxu0 0.0
    %226 = vmatpush1.msra.mxu0 %v69
    %227 = vmatprep.subr.mxu0 0.0
    %228 = vmatpush1.msra.mxu0 %v70
    %229 = vmatprep.subr.mxu0 0.0
    %230 = vmatpush1.msra.mxu0 %v71
    %231 = vmatprep.subr.mxu0 0.0
    %232 = vmatpush1.msra.mxu0 %v72
    %233 = vmatprep.subr.mxu0 0.0
    %234 = vmatpush1.msra.mxu0 %v73
    %235 = vmatprep.subr.mxu0 0.0
    %236 = vmatpush1.msra.mxu0 %v74
    %237 = vmatprep.subr.mxu0 0.0
    %238 = vmatpush1.msra.mxu0 %v75
    %239 = vmatprep.subr.mxu0 0.0
    %240 = vmatpush1.msra.mxu0 %v76
    %241 = vmatprep.subr.mxu0 0.0
    %242 = vmatpush1.msra.mxu0 %v77
    %243 = vmatprep.subr.mxu0 0.0
    %244 = vmatpush1.msra.mxu0 %v78
    %245 = vmatprep.subr.mxu0 0.0
    %246 = vmatpush1.msra.mxu0 %v79
    %247 = vmatprep.subr.mxu0 0.0
    %248 = vmatpush1.msra.mxu0 %v80
    %249 = vmatprep.subr.mxu0 0.0
    %250 = vmatpush1.msra.mxu0 %v81
    %251 = vmatprep.subr.mxu0 0.0
    %252 = vmatpush1.msra.mxu0 %v82
    %253 = vmatprep.subr.mxu0 0.0
    %254 = vmatpush1.msra.mxu0 %v83
    %255 = vmatprep.subr.mxu0 0.0
    %256 = vmatpush1.msra.mxu0 %v84
    %257 = vmatprep.subr.mxu0 0.0
    %258 = vmatpush1.msra.mxu0 %v85
    %259 = vmatprep.subr.mxu0 0.0
    %260 = vmatpush1.msra.mxu0 %v86
    %261 = vmatprep.subr.mxu0 0.0
    %262 = vmatpush1.msra.mxu0 %v87
    %263 = vmatprep.subr.mxu0 0.0
    %264 = vmatpush1.msra.mxu0 %v88
    %265 = vmatprep.subr.mxu0 0.0
    %266 = vmatpush1.msra.mxu0 %v89
    %267 = vmatprep.subr.mxu0 0.0
    %268 = vmatpush1.msra.mxu0 %v90
    %269 = vmatprep.subr.mxu0 0.0
    %270 = vmatpush1.msra.mxu0 %v91
    %271 = vmatprep.mubr.f32.mxu0 %v24
    %272 = vmatmul.mubr.f32.gmra.mrb[0].mxu0 %v23
    %v273 = vpop.f32.mrb[0].mxu0
    %v274 = vadd.f32 %v204, %v273
    %v275 = vpop.f32.mrb[0].mxu0
    %276 = vdwg.mxu0
    %277 = vmatprep.subr.mxu0 0.0
    %278 = vmatpush1.msra.mxu0 %v92
    %279 = vmatprep.subr.mxu0 0.0
    %280 = vmatpush1.msra.mxu0 %v93
    %281 = vmatprep.subr.mxu0 0.0
    %282 = vmatpush1.msra.mxu0 %v94
    %283 = vmatprep.subr.mxu0 0.0
    %284 = vmatpush1.msra.mxu0 %v95
    %285 = vmatprep.subr.mxu0 0.0
    %286 = vmatpush1.msra.mxu0 %v96
    %287 = vmatprep.subr.mxu0 0.0
    %288 = vmatpush1.msra.mxu0 %v97
    %289 = vmatprep.subr.mxu0 0.0
    %290 = vmatpush1.msra.mxu0 %v98
    %291 = vmatprep.subr.mxu0 0.0
    %292 = vmatpush1.msra.mxu0 %v99
    %293 = vmatprep.subr.mxu0 0.0
    %294 = vmatpush1.msra.mxu0 %v100
    %295 = vmatprep.subr.mxu0 0.0
    %296 = vmatpush1.msra.mxu0 %v101
    %297 = vmatprep.subr.mxu0 0.0
    %298 = vmatpush1.msra.mxu0 %v102
    %299 = vmatprep.subr.mxu0 0.0
    %300 = vmatpush1.msra.mxu0 %v103
    %301 = vmatprep.subr.mxu0 0.0
    %302 = vmatpush1.msra.mxu0 %v104
    %303 = vmatprep.subr.mxu0 0.0
    %304 = vmatpush1.msra.mxu0 %v105
    %305 = vmatprep.subr.mxu0 0.0
    %306 = vmatpush1.msra.mxu0 %v106
    %307 = vmatprep.subr.mxu0 0.0
    %308 = vmatpush1.msra.mxu0 %v107
    %309 = vmatprep.subr.mxu0 0.0
    %310 = vmatpush1.msra.mxu0 %v108
    %311 = vmatprep.subr.mxu0 0.0
    %312 = vmatpush1.msra.mxu0 %v109
    %313 = vmatprep.subr.mxu0 0.0
    %314 = vmatpush1.msra.mxu0 %v110
    %315 = vmatprep.subr.mxu0 0.0
    %316 = vmatpush1.msra.mxu0 %v111
    %317 = vmatprep.subr.mxu0 0.0
    %318 = vmatpush1.msra.mxu0 %v112
    %319 = vmatprep.subr.mxu0 0.0
    %320 = vmatpush1.msra.mxu0 %v113
    %321 = vmatprep.subr.mxu0 0.0
    %322 = vmatpush1.msra.mxu0 %v114
    %323 = vmatprep.subr.mxu0 0.0
    %324 = vmatpush1.msra.mxu0 %v115
    %325 = vmatprep.subr.mxu0 0.0
    %326 = vmatpush1.msra.mxu0 %v116
    %327 = vmatprep.subr.mxu0 0.0
    %328 = vmatpush1.msra.mxu0 %v117
    %329 = vmatprep.subr.mxu0 0.0
    %330 = vmatpush1.msra.mxu0 %v118
    %331 = vmatprep.subr.mxu0 0.0
    %332 = vmatpush1.msra.mxu0 %v119
    %333 = vmatprep.subr.mxu0 0.0
    %334 = vmatpush1.msra.mxu0 %v120
    %335 = vmatprep.subr.mxu0 0.0
    %336 = vmatpush1.msra.mxu0 %v121
    %337 = vmatprep.subr.mxu0 0.0
    %338 = vmatpush1.msra.mxu0 %v122
    %339 = vmatprep.subr.mxu0 0.0
    %340 = vmatpush1.msra.mxu0 %v123
    %341 = vmatprep.mubr.f32.mxu0 %v26
    %342 = vmatmul.mubr.f32.gmra.mrb[0].mxu0 %v25
    %v343 = vpop.f32.mrb[0].mxu0
    %v344 = vadd.f32 %v274, %v343
    %v345 = vpop.f32.mrb[0].mxu0
    %346 = vdwg.mxu0
    %347 = vmatprep.subr.mxu0 0.0
    %348 = vmatpush1.msra.mxu0 %v124
    %349 = vmatprep.subr.mxu0 0.0
    %350 = vmatpush1.msra.mxu0 %v125
    %351 = vmatprep.subr.mxu0 0.0
    %352 = vmatpush1.msra.mxu0 0.0
    %353 = vmatprep.subr.mxu0 0.0
    %354 = vmatpush1.msra.mxu0 0.0
    %355 = vmatprep.subr.mxu0 0.0
    %356 = vmatpush1.msra.mxu0 0.0
    %357 = vmatprep.subr.mxu0 0.0
    %358 = vmatpush1.msra.mxu0 0.0
    %359 = vmatprep.subr.mxu0 0.0
    %360 = vmatpush1.msra.mxu0 0.0
    %361 = vmatprep.subr.mxu0 0.0
    %362 = vmatpush1.msra.mxu0 0.0
    %363 = vmatprep.subr.mxu0 0.0
    %364 = vmatpush1.msra.mxu0 0.0
    %365 = vmatprep.subr.mxu0 0.0
    %366 = vmatpush1.msra.mxu0 0.0
    %367 = vmatprep.subr.mxu0 0.0
    %368 = vmatpush1.msra.mxu0 0.0
    %369 = vmatprep.subr.mxu0 0.0
    %370 = vmatpush1.msra.mxu0 0.0
    %371 = vmatprep.subr.mxu0 0.0
    %372 = vmatpush1.msra.mxu0 0.0
    %373 = vmatprep.subr.mxu0 0.0
    %374 = vmatpush1.msra.mxu0 0.0
    %375 = vmatprep.subr.mxu0 0.0
    %376 = vmatpush1.msra.mxu0 0.0
    %377 = vmatprep.subr.mxu0 0.0
    %378 = vmatpush1.msra.mxu0 0.0
    %379 = vmatprep.subr.mxu0 0.0
    %380 = vmatpush1.msra.mxu0 0.0
    %381 = vmatprep.subr.mxu0 0.0
    %382 = vmatpush1.msra.mxu0 0.0
    %383 = vmatprep.subr.mxu0 0.0
    %384 = vmatpush1.msra.mxu0 0.0
    %385 = vmatprep.subr.mxu0 0.0
    %386 = vmatpush1.msra.mxu0 0.0
    %387 = vmatprep.subr.mxu0 0.0
    %388 = vmatpush1.msra.mxu0 0.0
    %389 = vmatprep.subr.mxu0 0.0
    %390 = vmatpush1.msra.mxu0 0.0
    %391 = vmatprep.subr.mxu0 0.0
    %392 = vmatpush1.msra.mxu0 0.0
    %393 = vmatprep.subr.mxu0 0.0
    %394 = vmatpush1.msra.mxu0 0.0
    %395 = vmatprep.subr.mxu0 0.0
    %396 = vmatpush1.msra.mxu0 0.0
    %397 = vmatprep.subr.mxu0 0.0
    %398 = vmatpush1.msra.mxu0 0.0
    %399 = vmatprep.subr.mxu0 0.0
    %400 = vmatpush1.msra.mxu0 0.0
    %401 = vmatprep.subr.mxu0 0.0
    %402 = vmatpush1.msra.mxu0 0.0
    %403 = vmatprep.subr.mxu0 0.0
    %404 = vmatpush1.msra.mxu0 0.0
    %405 = vmatprep.subr.mxu0 0.0
    %406 = vmatpush1.msra.mxu0 0.0
    %407 = vmatprep.subr.mxu0 0.0
    %408 = vmatpush1.msra.mxu0 0.0
    %409 = vmatprep.subr.mxu0 0.0
    %410 = vmatpush1.msra.mxu0 0.0
    %411 = vmatprep.mubr.f32.mxu0 0.0
    %412 = vmatmul.mubr.f32.gmra.mrb[0].mxu0 %v135
    %v413 = vpop.f32.mrb[0].mxu0
    %v414 = vadd.f32 %v344, %v413
    %v415 = vpop.f32.mrb[0].mxu0
    %416 = vdwg.mxu0
    %v417 = vtanh.pop %v414
    %v418 = vld [vmem:[%s3] sm:$0xff]
    %v419 = vld [vmem:[%s3 + $0x8] sm:$0xff]
    %v420 = vld [vmem:[%s3 + $0x10] sm:$0xff]
    %v421 = vld [vmem:[%s3 + $0x18] sm:$0xff]
    %v422 = vld [vmem:[%s3 + $0x20] sm:$0xff]
    %v423 = vld [vmem:[%s3 + $0x28] sm:$0xff]
    %v424 = vld [vmem:[%s3 + $0x30] sm:$0xff]
    %v425 = vld [vmem:[%s3 + $0x38] sm:$0xff]
    %v426 = vld [vmem:[%s3 + $0x40] sm:$0xff]
    %v427 = vld [vmem:[%s3 + $0x48] sm:$0xff]
    %v428 = vld [vmem:[%s3 + $0x50] sm:$0xff]
    %v429 = vld [vmem:[%s3 + $0x58] sm:$0xff]
    %v430 = vld [vmem:[%s3 + $0x60] sm:$0xff]
    %v431 = vld [vmem:[%s3 + $0x68] sm:$0xff]
    %v432 = vld [vmem:[%s3 + $0x70] sm:$0xff]
    %v433 = vld [vmem:[%s3 + $0x78] sm:$0xff]
    %v434 = vld [vmem:[%s3 + $0x80] sm:$0xff]
    %v435 = vld [vmem:[%s3 + $0x88] sm:$0xff]
    %v436 = vld [vmem:[%s3 + $0x90] sm:$0xff]
    %v437 = vld [vmem:[%s3 + $0x98] sm:$0xff]
    %v438 = vld [vmem:[%s3 + $0xa0] sm:$0xff]
    %v439 = vld [vmem:[%s3 + $0xa8] sm:$0xff]
    %v440 = vld [vmem:[%s3 + $0xb0] sm:$0xff]
    %v441 = vld [vmem:[%s3 + $0xb8] sm:$0xff]
    %v442 = vld [vmem:[%s3 + $0xc0] sm:$0xff]
    %v443 = vld [vmem:[%s3 + $0xc8] sm:$0xff]
    %v444 = vld [vmem:[%s3 + $0xd0] sm:$0xff]
    %v445 = vld [vmem:[%s3 + $0xd8] sm:$0xff]
    %v446 = vld [vmem:[%s3 + $0xe0] sm:$0xff]
    %v447 = vld [vmem:[%s3 + $0xe8] sm:$0xff]
    %v448 = vld [vmem:[%s3 + $0xf0] sm:$0xff]
    %v449 = vld [vmem:[%s3 + $0xf8] sm:$0xff]
    %v450 = vld [vmem:[%s3 + $0x100] sm:$0xff]
    %v451 = vld [vmem:[%s3 + $0x108] sm:$0xff]
    %v452 = vld [vmem:[%s3 + $0x110] sm:$0xff]
    %v453 = vld [vmem:[%s3 + $0x118] sm:$0xff]
    %v454 = vld [vmem:[%s3 + $0x120] sm:$0xff]
    %v455 = vld [vmem:[%s3 + $0x128] sm:$0xff]
    %v456 = vld [vmem:[%s3 + $0x130] sm:$0xff]
    %v457 = vld [vmem:[%s3 + $0x138] sm:$0xff]
    %v458 = vld [vmem:[%s3 + $0x140] sm:$0xff]
    %v459 = vld [vmem:[%s3 + $0x148] sm:$0xff]
    %v460 = vld [vmem:[%s3 + $0x150] sm:$0xff]
    %v461 = vld [vmem:[%s3 + $0x158] sm:$0xff]
    %v462 = vld [vmem:[%s3 + $0x160] sm:$0xff]
    %v463 = vld [vmem:[%s3 + $0x168] sm:$0xff]
    %v464 = vld [vmem:[%s3 + $0x170] sm:$0xff]
    %v465 = vld [vmem:[%s3 + $0x178] sm:$0xff]
    %v466 = vld [vmem:[%s3 + $0x180] sm:$0xff]
    %v467 = vld [vmem:[%s3 + $0x188] sm:$0xff]
    %v468 = vld [vmem:[%s3 + $0x190] sm:$0xff]
    %v469 = vld [vmem:[%s3 + $0x198] sm:$0xff]
    %v470 = vld [vmem:[%s3 + $0x1a0] sm:$0xff]
    %v471 = vld [vmem:[%s3 + $0x1a8] sm:$0xff]
    %v472 = vld [vmem:[%s3 + $0x1b0] sm:$0xff]
    %v473 = vld [vmem:[%s3 + $0x1b8] sm:$0xff]
    %v474 = vld [vmem:[%s3 + $0x1c0] sm:$0xff]
    %v475 = vld [vmem:[%s3 + $0x1c8] sm:$0xff]
    %v476 = vld [vmem:[%s3 + $0x1d0] sm:$0xff]
    %v477 = vld [vmem:[%s3 + $0x1d8] sm:$0xff]
    %v478 = vld [vmem:[%s3 + $0x1e0] sm:$0xff]
    %v479 = vld [vmem:[%s3 + $0x1e8] sm:$0xff]
    %v480 = vld [vmem:[%s3 + $0x1f0] sm:$0xff]
    %v481 = vld [vmem:[%s3 + $0x1f8] sm:$0xff]
    %v482 = vld [vmem:[%s3 + $0x200] sm:$0xff]
    %v483 = vld [vmem:[%s3 + $0x208] sm:$0xff]
    %v484 = vld [vmem:[%s3 + $0x210] sm:$0xff]
    %v485 = vld [vmem:[%s3 + $0x218] sm:$0xff]
    %v486 = vld [vmem:[%s3 + $0x220] sm:$0xff]
    %v487 = vld [vmem:[%s3 + $0x228] sm:$0xff]
    %v488 = vld [vmem:[%s3 + $0x230] sm:$0xff]
    %v489 = vld [vmem:[%s3 + $0x238] sm:$0xff]
    %v490 = vld [vmem:[%s3 + $0x240] sm:$0xff]
    %v491 = vld [vmem:[%s3 + $0x248] sm:$0xff]
    %v492 = vld [vmem:[%s3 + $0x250] sm:$0xff]
    %v493 = vld [vmem:[%s3 + $0x258] sm:$0xff]
    %v494 = vld [vmem:[%s3 + $0x260] sm:$0xff]
    %v495 = vld [vmem:[%s3 + $0x268] sm:$0xff]
    %v496 = vld [vmem:[%s3 + $0x270] sm:$0xff]
    %v497 = vld [vmem:[%s3 + $0x278] sm:$0xff]
    %v498 = vld [vmem:[%s3 + $0x280] sm:$0xff]
    %v499 = vld [vmem:[%s3 + $0x288] sm:$0xff]
    %v500 = vld [vmem:[%s3 + $0x290] sm:$0xff]
    %v501 = vld [vmem:[%s3 + $0x298] sm:$0xff]
    %v502 = vld [vmem:[%s3 + $0x2a0] sm:$0xff]
    %v503 = vld [vmem:[%s3 + $0x2a8] sm:$0xff]
    %v504 = vld [vmem:[%s3 + $0x2b0] sm:$0xff]
    %v505 = vld [vmem:[%s3 + $0x2b8] sm:$0xff]
    %v506 = vld [vmem:[%s3 + $0x2c0] sm:$0xff]
    %v507 = vld [vmem:[%s3 + $0x2c8] sm:$0xff]
    %v508 = vld [vmem:[%s3 + $0x2d0] sm:$0xff]
    %v509 = vld [vmem:[%s3 + $0x2d8] sm:$0xff]
    %v510 = vld [vmem:[%s3 + $0x2e0] sm:$0xff]
    %v511 = vld [vmem:[%s3 + $0x2e8] sm:$0xff]
    %v512 = vld [vmem:[%s3 + $0x2f0] sm:$0xff]
    %v513 = vld [vmem:[%s3 + $0x2f8] sm:$0xff]
    %v514 = vld [vmem:[%s3 + $0x300] sm:$0xff]
    %v515 = vld [vmem:[%s3 + $0x308] sm:$0xff]
    %v516 = vld [vmem:[%s3 + $0x310] sm:$0xff]
    %v517 = vld [vmem:[%s3 + $0x318] sm:$0xff]
    %v518 = vld [vmem:[%s3 + $0x320] sm:$0xff]
    %v519 = vld [vmem:[%s3 + $0x328] sm:$0xff]
    %v520 = vld [vmem:[%s3 + $0x330] sm:$0xff]
    %v521 = vld [vmem:[%s3 + $0x338] sm:$0xff]
    %v522 = vld [vmem:[%s3 + $0x340] sm:$0xff]
    %v523 = vld [vmem:[%s3 + $0x348] sm:$0xff]
    %v524 = vld [vmem:[%s3 + $0x350] sm:$0xff]
    %v525 = vld [vmem:[%s3 + $0x358] sm:$0xff]
    %v526 = vld [vmem:[%s3 + $0x360] sm:$0xff]
    %v527 = vld [vmem:[%s3 + $0x368] sm:$0xff]
    %v528 = vld [vmem:[%s3 + $0x370] sm:$0xff]
    %v529 = vld [vmem:[%s3 + $0x378] sm:$0xff]
    %v530 = vld [vmem:[%s4] sm:$0x7f]
    %v532 = vlaneseq
    %v533 = vshrl.u32 %v532, 7
    %v534 = vsub.s32 0, %v533
    %v535 = vrot.slane %v530, %v534
    %v536 = vlaneseq
    %v537 = vshrl.u32 %v536, 7
    %v538 = vsub.s32 1, %v537
    %v539 = vrot.slane %v530, %v538
    %v540 = vlaneseq
    %v541 = vshrl.u32 %v540, 7
    %v542 = vsub.s32 2, %v541
    %v543 = vrot.slane %v530, %v542
    %v544 = vlaneseq
    %v545 = vshrl.u32 %v544, 7
    %v546 = vsub.s32 3, %v545
    %v547 = vrot.slane %v530, %v546
    %v548 = vlaneseq
    %v549 = vshrl.u32 %v548, 7
    %v550 = vsub.s32 4, %v549
    %v551 = vrot.slane %v530, %v550
    %v552 = vlaneseq
    %v553 = vshrl.u32 %v552, 7
    %v554 = vsub.s32 5, %v553
    %v555 = vrot.slane %v530, %v554
    %v556 = vlaneseq
    %v557 = vshrl.u32 %v556, 7
    %v558 = vsub.s32 6, %v557
    %v559 = vrot.slane %v530, %v558
    %567 = vmatprep.subr.mxu0 %v419
    %568 = vmatpush1.msra.mxu0 %v418
    %569 = vmatprep.subr.mxu0 %v426
    %570 = vmatpush1.msra.mxu0 %v425
    %571 = vmatprep.subr.mxu0 %v433
    %572 = vmatpush1.msra.mxu0 %v432
    %573 = vmatprep.subr.mxu0 %v440
    %574 = vmatpush1.msra.mxu0 %v439
    %575 = vmatprep.subr.mxu0 %v447
    %576 = vmatpush1.msra.mxu0 %v446
    %577 = vmatprep.subr.mxu0 %v454
    %578 = vmatpush1.msra.mxu0 %v453
    %579 = vmatprep.subr.mxu0 %v461
    %580 = vmatpush1.msra.mxu0 %v460
    %581 = vmatprep.subr.mxu0 %v468
    %582 = vmatpush1.msra.mxu0 %v467
    %583 = vmatprep.subr.mxu0 %v475
    %584 = vmatpush1.msra.mxu0 %v474
    %585 = vmatprep.subr.mxu0 %v482
    %586 = vmatpush1.msra.mxu0 %v481
    %587 = vmatprep.subr.mxu0 %v489
    %588 = vmatpush1.msra.mxu0 %v488
    %589 = vmatprep.subr.mxu0 %v496
    %590 = vmatpush1.msra.mxu0 %v495
    %591 = vmatprep.subr.mxu0 %v503
    %592 = vmatpush1.msra.mxu0 %v502
    %593 = vmatprep.subr.mxu0 %v510
    %594 = vmatpush1.msra.mxu0 %v509
    %595 = vmatprep.subr.mxu0 %v517
    %596 = vmatpush1.msra.mxu0 %v516
    %597 = vmatprep.subr.mxu0 %v524
    %598 = vmatpush1.msra.mxu0 %v523
    %599 = vmatprep.subr.mxu0 0.0
    %600 = vmatpush1.msra.mxu0 0.0
    %601 = vmatprep.subr.mxu0 0.0
    %602 = vmatpush1.msra.mxu0 0.0
    %603 = vmatprep.subr.mxu0 0.0
    %604 = vmatpush1.msra.mxu0 0.0
    %605 = vmatprep.subr.mxu0 0.0
    %606 = vmatpush1.msra.mxu0 0.0
    %607 = vmatprep.subr.mxu0 0.0
    %608 = vmatpush1.msra.mxu0 0.0
    %609 = vmatprep.subr.mxu0 0.0
    %610 = vmatpush1.msra.mxu0 0.0
    %611 = vmatprep.subr.mxu0 0.0
    %612 = vmatpush1.msra.mxu0 0.0
    %613 = vmatprep.subr.mxu0 0.0
    %614 = vmatpush1.msra.mxu0 0.0
    %615 = vmatprep.subr.mxu0 0.0
    %616 = vmatpush1.msra.mxu0 0.0
    %617 = vmatprep.subr.mxu0 0.0
    %618 = vmatpush1.msra.mxu0 0.0
    %619 = vmatprep.subr.mxu0 0.0
    %620 = vmatpush1.msra.mxu0 0.0
    %621 = vmatprep.subr.mxu0 0.0
    %622 = vmatpush1.msra.mxu0 0.0
    %623 = vmatprep.subr.mxu0 0.0
    %624 = vmatpush1.msra.mxu0 0.0
    %625 = vmatprep.subr.mxu0 0.0
    %626 = vmatpush1.msra.mxu0 0.0
    %627 = vmatprep.subr.mxu0 0.0
    %628 = vmatpush1.msra.mxu0 0.0
    %629 = vmatprep.subr.mxu0 0.0
    %630 = vmatpush1.msra.mxu0 0.0
    %631 = vmatprep.mubr.f32.mxu0 0.0
    %632 = vmatmul.mubr.f32.gmra.mrb[0].mxu0 %v417
    %v633 = vpop.f32.mrb[0].mxu0
    %v634 = vadd.f32 %v535, %v633
    %v635 = vpop.f32.mrb[0].mxu0
    %v636 = vadd.f32 %v539, %v635
    %637 = vdwg.mxu0
    %638 = vmatprep.subr.mxu0 %v421
    %639 = vmatpush1.msra.mxu0 %v420
    %640 = vmatprep.subr.mxu0 %v428
    %641 = vmatpush1.msra.mxu0 %v427
    %642 = vmatprep.subr.mxu0 %v435
    %643 = vmatpush1.msra.mxu0 %v434
    %644 = vmatprep.subr.mxu0 %v442
    %645 = vmatpush1.msra.mxu0 %v441
    %646 = vmatprep.subr.mxu0 %v449
    %647 = vmatpush1.msra.mxu0 %v448
    %648 = vmatprep.subr.mxu0 %v456
    %649 = vmatpush1.msra.mxu0 %v455
    %650 = vmatprep.subr.mxu0 %v463
    %651 = vmatpush1.msra.mxu0 %v462
    %652 = vmatprep.subr.mxu0 %v470
    %653 = vmatpush1.msra.mxu0 %v469
    %654 = vmatprep.subr.mxu0 %v477
    %655 = vmatpush1.msra.mxu0 %v476
    %656 = vmatprep.subr.mxu0 %v484
    %657 = vmatpush1.msra.mxu0 %v483
    %658 = vmatprep.subr.mxu0 %v491
    %659 = vmatpush1.msra.mxu0 %v490
    %660 = vmatprep.subr.mxu0 %v498
    %661 = vmatpush1.msra.mxu0 %v497
    %662 = vmatprep.subr.mxu0 %v505
    %663 = vmatpush1.msra.mxu0 %v504
    %664 = vmatprep.subr.mxu0 %v512
    %665 = vmatpush1.msra.mxu0 %v511
    %666 = vmatprep.subr.mxu0 %v519
    %667 = vmatpush1.msra.mxu0 %v518
    %668 = vmatprep.subr.mxu0 %v526
    %669 = vmatpush1.msra.mxu0 %v525
    %670 = vmatprep.subr.mxu0 0.0
    %671 = vmatpush1.msra.mxu0 0.0
    %672 = vmatprep.subr.mxu0 0.0
    %673 = vmatpush1.msra.mxu0 0.0
    %674 = vmatprep.subr.mxu0 0.0
    %675 = vmatpush1.msra.mxu0 0.0
    %676 = vmatprep.subr.mxu0 0.0
    %677 = vmatpush1.msra.mxu0 0.0
    %678 = vmatprep.subr.mxu0 0.0
    %679 = vmatpush1.msra.mxu0 0.0
    %680 = vmatprep.subr.mxu0 0.0
    %681 = vmatpush1.msra.mxu0 0.0
    %682 = vmatprep.subr.mxu0 0.0
    %683 = vmatpush1.msra.mxu0 0.0
    %684 = vmatprep.subr.mxu0 0.0
    %685 = vmatpush1.msra.mxu0 0.0
    %686 = vmatprep.subr.mxu0 0.0
    %687 = vmatpush1.msra.mxu0 0.0
    %688 = vmatprep.subr.mxu0 0.0
    %689 = vmatpush1.msra.mxu0 0.0
    %690 = vmatprep.subr.mxu0 0.0
    %691 = vmatpush1.msra.mxu0 0.0
    %692 = vmatprep.subr.mxu0 0.0
    %693 = vmatpush1.msra.mxu0 0.0
    %694 = vmatprep.subr.mxu0 0.0
    %695 = vmatpush1.msra.mxu0 0.0
    %696 = vmatprep.subr.mxu0 0.0
    %697 = vmatpush1.msra.mxu0 0.0
    %698 = vmatprep.subr.mxu0 0.0
    %699 = vmatpush1.msra.mxu0 0.0
    %700 = vmatprep.subr.mxu0 0.0
    %701 = vmatpush1.msra.mxu0 0.0
    %702 = vmatprep.mubr.f32.mxu0 0.0
    %703 = vmatmul.mubr.f32.gmra.mrb[0].mxu0 %v417
    %v704 = vpop.f32.mrb[0].mxu0
    %v705 = vadd.f32 %v543, %v704
    %v706 = vpop.f32.mrb[0].mxu0
    %v707 = vadd.f32 %v547, %v706
    %708 = vdwg.mxu0
    %709 = vmatprep.subr.mxu0 %v423
    %710 = vmatpush1.msra.mxu0 %v422
    %711 = vmatprep.subr.mxu0 %v430
    %712 = vmatpush1.msra.mxu0 %v429
    %713 = vmatprep.subr.mxu0 %v437
    %714 = vmatpush1.msra.mxu0 %v436
    %715 = vmatprep.subr.mxu0 %v444
    %716 = vmatpush1.msra.mxu0 %v443
    %717 = vmatprep.subr.mxu0 %v451
    %718 = vmatpush1.msra.mxu0 %v450
    %719 = vmatprep.subr.mxu0 %v458
    %720 = vmatpush1.msra.mxu0 %v457
    %721 = vmatprep.subr.mxu0 %v465
    %722 = vmatpush1.msra.mxu0 %v464
    %723 = vmatprep.subr.mxu0 %v472
    %724 = vmatpush1.msra.mxu0 %v471
    %725 = vmatprep.subr.mxu0 %v479
    %726 = vmatpush1.msra.mxu0 %v478
    %727 = vmatprep.subr.mxu0 %v486
    %728 = vmatpush1.msra.mxu0 %v485
    %729 = vmatprep.subr.mxu0 %v493
    %730 = vmatpush1.msra.mxu0 %v492
    %731 = vmatprep.subr.mxu0 %v500
    %732 = vmatpush1.msra.mxu0 %v499
    %733 = vmatprep.subr.mxu0 %v507
    %734 = vmatpush1.msra.mxu0 %v506
    %735 = vmatprep.subr.mxu0 %v514
    %736 = vmatpush1.msra.mxu0 %v513
    %737 = vmatprep.subr.mxu0 %v521
    %738 = vmatpush1.msra.mxu0 %v520
    %739 = vmatprep.subr.mxu0 %v528
    %740 = vmatpush1.msra.mxu0 %v527
    %741 = vmatprep.subr.mxu0 0.0
    %742 = vmatpush1.msra.mxu0 0.0
    %743 = vmatprep.subr.mxu0 0.0
    %744 = vmatpush1.msra.mxu0 0.0
    %745 = vmatprep.subr.mxu0 0.0
    %746 = vmatpush1.msra.mxu0 0.0
    %747 = vmatprep.subr.mxu0 0.0
    %748 = vmatpush1.msra.mxu0 0.0
    %749 = vmatprep.subr.mxu0 0.0
    %750 = vmatpush1.msra.mxu0 0.0
    %751 = vmatprep.subr.mxu0 0.0
    %752 = vmatpush1.msra.mxu0 0.0
    %753 = vmatprep.subr.mxu0 0.0
    %754 = vmatpush1.msra.mxu0 0.0
    %755 = vmatprep.subr.mxu0 0.0
    %756 = vmatpush1.msra.mxu0 0.0
    %757 = vmatprep.subr.mxu0 0.0
    %758 = vmatpush1.msra.mxu0 0.0
    %759 = vmatprep.subr.mxu0 0.0
    %760 = vmatpush1.msra.mxu0 0.0
    %761 = vmatprep.subr.mxu0 0.0
    %762 = vmatpush1.msra.mxu0 0.0
    %763 = vmatprep.subr.mxu0 0.0
    %764 = vmatpush1.msra.mxu0 0.0
    %765 = vmatprep.subr.mxu0 0.0
    %766 = vmatpush1.msra.mxu0 0.0
    %767 = vmatprep.subr.mxu0 0.0
    %768 = vmatpush1.msra.mxu0 0.0
    %769 = vmatprep.subr.mxu0 0.0
    %770 = vmatpush1.msra.mxu0 0.0
    %771 = vmatprep.subr.mxu0 0.0
    %772 = vmatpush1.msra.mxu0 0.0
    %773 = vmatprep.mubr.f32.mxu0 0.0
    %774 = vmatmul.mubr.f32.gmra.mrb[0].mxu0 %v417
    %v775 = vpop.f32.mrb[0].mxu0
    %v776 = vadd.f32 %v551, %v775
    %v777 = vpop.f32.mrb[0].mxu0
    %v778 = vadd.f32 %v555, %v777
    %779 = vdwg.mxu0
    %780 = vmatprep.subr.mxu0 0.0
    %781 = vmatpush1.msra.mxu0 %v424
    %782 = vmatprep.subr.mxu0 0.0
    %783 = vmatpush1.msra.mxu0 %v431
    %784 = vmatprep.subr.mxu0 0.0
    %785 = vmatpush1.msra.mxu0 %v438
    %786 = vmatprep.subr.mxu0 0.0
    %787 = vmatpush1.msra.mxu0 %v445
    %788 = vmatprep.subr.mxu0 0.0
    %789 = vmatpush1.msra.mxu0 %v452
    %790 = vmatprep.subr.mxu0 0.0
    %791 = vmatpush1.msra.mxu0 %v459
    %792 = vmatprep.subr.mxu0 0.0
    %793 = vmatpush1.msra.mxu0 %v466
    %794 = vmatprep.subr.mxu0 0.0
    %795 = vmatpush1.msra.mxu0 %v473
    %796 = vmatprep.subr.mxu0 0.0
    %797 = vmatpush1.msra.mxu0 %v480
    %798 = vmatprep.subr.mxu0 0.0
    %799 = vmatpush1.msra.mxu0 %v487
    %800 = vmatprep.subr.mxu0 0.0
    %801 = vmatpush1.msra.mxu0 %v494
    %802 = vmatprep.subr.mxu0 0.0
    %803 = vmatpush1.msra.mxu0 %v501
    %804 = vmatprep.subr.mxu0 0.0
    %805 = vmatpush1.msra.mxu0 %v508
    %806 = vmatprep.subr.mxu0 0.0
    %807 = vmatpush1.msra.mxu0 %v515
    %808 = vmatprep.subr.mxu0 0.0
    %809 = vmatpush1.msra.mxu0 %v522
    %810 = vmatprep.subr.mxu0 0.0
    %811 = vmatpush1.msra.mxu0 %v529
    %812 = vmatprep.subr.mxu0 0.0
    %813 = vmatpush1.msra.mxu0 0.0
    %814 = vmatprep.subr.mxu0 0.0
    %815 = vmatpush1.msra.mxu0 0.0
    %816 = vmatprep.subr.mxu0 0.0
    %817 = vmatpush1.msra.mxu0 0.0
    %818 = vmatprep.subr.mxu0 0.0
    %819 = vmatpush1.msra.mxu0 0.0
    %820 = vmatprep.subr.mxu0 0.0
    %821 = vmatpush1.msra.mxu0 0.0
    %822 = vmatprep.subr.mxu0 0.0
    %823 = vmatpush1.msra.mxu0 0.0
    %824 = vmatprep.subr.mxu0 0.0
    %825 = vmatpush1.msra.mxu0 0.0
    %826 = vmatprep.subr.mxu0 0.0
    %827 = vmatpush1.msra.mxu0 0.0
    %828 = vmatprep.subr.mxu0 0.0
    %829 = vmatpush1.msra.mxu0 0.0
    %830 = vmatprep.subr.mxu0 0.0
    %831 = vmatpush1.msra.mxu0 0.0
    %832 = vmatprep.subr.mxu0 0.0
    %833 = vmatpush1.msra.mxu0 0.0
    %834 = vmatprep.subr.mxu0 0.0
    %835 = vmatpush1.msra.mxu0 0.0
    %836 = vmatprep.subr.mxu0 0.0
    %837 = vmatpush1.msra.mxu0 0.0
    %838 = vmatprep.subr.mxu0 0.0
    %839 = vmatpush1.msra.mxu0 0.0
    %840 = vmatprep.subr.mxu0 0.0
    %841 = vmatpush1.msra.mxu0 0.0
    %842 = vmatprep.subr.mxu0 0.0
    %843 = vmatpush1.msra.mxu0 0.0
    %844 = vmatprep.mubr.f32.mxu0 0.0
    %845 = vmatmul.mubr.f32.gmra.mrb[0].mxu0 %v417
    %v846 = vpop.f32.mrb[0].mxu0
    %v847 = vadd.f32 %v559, %v846
    %v848 = vpop.f32.mrb[0].mxu0
    %849 = vdwg.mxu0
    %v850 = vtanh.pop %v634
    %v851 = vtanh.pop %v636
    %v852 = vtanh.pop %v705
    %v853 = vtanh.pop %v707
    %v854 = vtanh.pop %v776
    %v855 = vtanh.pop %v778
    %v856 = vtanh.pop %v847
    %857 = vst [vmem:[#allocation2] sm:$0xff] %v850
    %858 = vst [vmem:[#allocation2 + $0x8] sm:$0xff] %v851
    %859 = vst [vmem:[#allocation2 + $0x10] sm:$0xff] %v852
    %860 = vst [vmem:[#allocation2 + $0x18] sm:$0xff] %v853
    %861 = vst [vmem:[#allocation2 + $0x20] sm:$0xff] %v854
    %862 = vst [vmem:[#allocation2 + $0x28] sm:$0xff] %v855
    %863 = vst.msk [vmem:[#allocation2 + $0x30] sm:$0xff] %vm133, %v856
    // Predicated region
    $region22: #{tpu_custom_call.1} parent=1 // pred_check
      _
    $region23: #{tpu_custom_call.1} parent=1 // pred_check_branch
      %865 = sbr.rel (0) target = $region25
    $region24: #{tpu_custom_call.1} parent=1 // pred_region
      %s867 = ssub.s32 896, 896
      %868 = vsyncadd [#allocation3], %s867
      %s870 = sshll.u32 [#allocation2], 4
      %s871 = int_to_ptr.vmem [resolvable:$true] %s870
      %873 = dma.vmem_to_hbm [thread:$0]  %s871, 896, %s5, [#allocation3]
    $region25: #{tpu_custom_call.1} parent=1 // pred_fallthru
      _
    // Predicated region
    $region26: #{tpu_custom_call.1} parent=1 // pred_check
      _
    $region27: #{tpu_custom_call.1} parent=1 // pred_check_branch
      %875 = sbr.rel (0) target = $region29
    $region28: #{tpu_custom_call.1} parent=1 // pred_region
      %876 = dma.done [#allocation3], 896
    $region29: #{tpu_custom_call.1} parent=1 // pred_fallthru
      _
    %877 = vsyncpa [#allocation3], 1

</llo_original>
